<compile_context>
chip_gen: v6e
topology: v6e:2x2x1
jax: 0.10.0
libtpu: 0.0.40
codegen_flags: <defaults>
</compile_context>

<pallas_src>
import functools

import jax
import jax.numpy as jnp
from jax.experimental import pallas as pl
from jax.experimental.pallas import tpu as pltpu

NUM_CLASS = 2
IN_DIM, H1, H2 = 4, 120, 84
LANE = 128

H1_PAD = 128   # 120 -> 128
H2_PAD = 128   # 84  -> 128


def _round_up(n, m):
    return ((n + m - 1) // m) * m


def _mlp_kernel(xT_ref, w1_ref, b1_ref, w2_ref, b2_ref, w3_ref, b3_ref, o_ref):
    """Fused 3-layer MLP on one batch tile, batch on the lane axis.

    xT_ref : (IN_DIM, TB) f32      w1 : (128, 4)   f32   b1 : (128, 1) f32
                                   w2 : (128, 128) bf16  b2 : (128, 1) f32
                                   w3 : (2, 128)   bf16  b3 : (2, 1)   f32
    o_ref  : (NUM_CLASS, TB) f32
    """
    xT = xT_ref[...]                                       # (4, TB)
    w1 = w1_ref[...]                                       # (128, 4)

    # ---- fc1 + ReLU as a rank-4 VPU update (K=4 is too small for the MXU) --
    # (128,1) * (1,TB) broadcasts -> (128, TB); 4 fused multiply-adds on VALU.
    h = w1[:, 0:1] * xT[0:1, :]
    for j in range(1, IN_DIM):
        h = h + w1[:, j:j + 1] * xT[j:j + 1, :]
    h = jnp.maximum(h + b1_ref[...], 0.0)                  # (128, TB) f32

    # ---- fc2 + ReLU on the MXU (bf16 operands, f32 accumulation) -----------
    h = jnp.dot(w2_ref[...], h.astype(w2_ref.dtype),
                preferred_element_type=jnp.float32)
    h = jnp.maximum(h + b2_ref[...], 0.0)                  # (128, TB) f32

    # ---- fc3 logits ---------------------------------------------------------
    out = jnp.dot(w3_ref[...], h.astype(w3_ref.dtype),
                  preferred_element_type=jnp.float32) + b3_ref[...]
    o_ref[...] = out.astype(o_ref.dtype)                   # (2, TB), lane-dense


def _pad_params(p, mm_dtype):
    """Zero-pad hidden dims to 128; PyTorch (out, in) orientation.

    fc1 stays f32 (VPU path); fc2/fc3 weights are cast to the matmul dtype.
    Biases stay f32 (added to the f32 accumulator)."""
    w1 = jnp.zeros((H1_PAD, IN_DIM), jnp.float32).at[:H1, :].set(p["w1"])
    b1 = jnp.zeros((H1_PAD, 1), jnp.float32).at[:H1, 0].set(p["b1"])
    w2 = (jnp.zeros((H2_PAD, H1_PAD), jnp.float32)
          .at[:H2, :H1].set(p["w2"]).astype(mm_dtype))
    b2 = jnp.zeros((H2_PAD, 1), jnp.float32).at[:H2, 0].set(p["b2"])
    w3 = (jnp.zeros((NUM_CLASS, H2_PAD), jnp.float32)
          .at[:, :H2].set(p["w3"]).astype(mm_dtype))
    b3 = p["b3"].reshape(NUM_CLASS, 1).astype(jnp.float32)
    return w1, b1, w2, b2, w3, b3


@functools.partial(jax.jit, static_argnames=("tb_max", "use_bf16"))
def dnn_forward(x, params, *, tb_max=8192, use_bf16=True):
    """x: (B, 4) float32.  params: PyTorch-layout weights (out,in) / biases (out,)."""
    B = x.shape[0]

    # Batch -> lane axis; pick a tile that (a) is large (>= amortizes the
    # ~600-cycle per-step cost), but (b) still yields >= ~4 grid steps for
    # large batches so v7x's two TensorCores both get work.
    B_lane = _round_up(max(B, 1), LANE)
    TB = min(tb_max, max(LANE, _round_up(B_lane // 4, LANE)))
    B_pad = _round_up(B_lane, TB)
    grid = (B_pad // TB,)

    # TODO(synk): ideally the upstream producer emits x feature-major (4, B);
    # this pad+transpose is an extra (small) HBM round trip of the input.
    xT = jnp.pad(x.astype(jnp.float32), ((0, B_pad - B), (0, 0))).T   # (4, B_pad)

    mm_dtype = jnp.bfloat16 if use_bf16 else jnp.float32
    w1p, b1p, w2p, b2p, w3p, b3p = _pad_params(params, mm_dtype)

    # Weights / biases: full-array blocks with constant index_map -> fetched
    # once, VMEM-resident across all batch tiles.
    resident = lambda arr: pl.BlockSpec(arr.shape, lambda i: (0, 0))

    out_T = pl.pallas_call(
        _mlp_kernel,
        out_shape=jax.ShapeDtypeStruct((NUM_CLASS, B_pad), jnp.float32),
        grid=grid,
        in_specs=[
            pl.BlockSpec((IN_DIM, TB), lambda i: (0, i)),   # x tiles stream in
            resident(w1p), resident(b1p),
            resident(w2p), resident(b2p),
            resident(w3p), resident(b3p),
        ],
        out_specs=pl.BlockSpec((NUM_CLASS, TB), lambda i: (0, i)),
        compiler_params=pltpu.CompilerParams(
            dimension_semantics=("parallel",),        # megacore-shardable batch axis
            vmem_limit_bytes=32 * 1024 * 1024,
        ),
    )(xT, w1p, b1p, w2p, b2p, w3p, b3p)

    # Layout plumbing back to the PyTorch convention: (2, B_pad) -> (B, 2).
    return out_T[:, :B].T


def init_params(key):
    """PyTorch nn.Linear default init: U(-1/sqrt(fan_in), 1/sqrt(fan_in))."""
    ks = jax.random.split(key, 6)

    def linear(kw, kb, fan_in, fan_out):
        bound = 1.0 / jnp.sqrt(fan_in)
        w = jax.random.uniform(kw, (fan_out, fan_in), jnp.float32, -bound, bound)
        b = jax.random.uniform(kb, (fan_out,), jnp.float32, -bound, bound)
        return w, b

    w1, b1 = linear(ks[0], ks[1], IN_DIM, H1)
    w2, b2 = linear(ks[2], ks[3], H1, H2)
    w3, b3 = linear(ks[4], ks[5], H2, NUM_CLASS)
    return {"w1": w1, "b1": b1, "w2": w2, "b2": b2, "w3": w3, "b3": b3}


def dnn_reference(x, p):
    h = jnp.maximum(x @ p["w1"].T + p["b1"], 0.0)
    h = jnp.maximum(h @ p["w2"].T + p["b2"], 0.0)
    return h @ p["w3"].T + p["b3"]


if __name__ == "__main__":
    key = jax.random.PRNGKey(0)
    k_params, k_x = jax.random.split(key)

    params = init_params(k_params)

    # Small batch, single tile.
    B = 8
    x = jax.random.normal(k_x, (B, IN_DIM), dtype=jnp.float32)
    ref = dnn_reference(x, params)

    out_f32 = dnn_forward(x, params, use_bf16=False)      # strict-parity path
    jax.block_until_ready(out_f32)
    assert out_f32.shape == (B, NUM_CLASS)
    assert jnp.allclose(out_f32, ref, atol=1e-4, rtol=1e-4)

    out_bf16 = dnn_forward(x, params)                     # default fast path
    jax.block_until_ready(out_bf16)
    assert out_bf16.shape == (B, NUM_CLASS)
    assert jnp.allclose(out_bf16, ref, atol=5e-2, rtol=5e-2)

    # Multi-tile batch to exercise the gridded / pipelined / parallel path.
    B2 = 4096 + 37
    x2 = jax.random.normal(jax.random.PRNGKey(1), (B2, IN_DIM), dtype=jnp.float32)
    ref2 = dnn_reference(x2, params)

    out2 = dnn_forward(x2, params)
    jax.block_until_ready(out2)
    assert out2.shape == (B2, NUM_CLASS)
    assert jnp.allclose(out2, ref2, atol=5e-2, rtol=5e-2)

    out2_f32 = dnn_forward(x2, params, use_bf16=False)
    jax.block_until_ready(out2_f32)
    assert jnp.allclose(out2_f32, ref2, atol=1e-4, rtol=1e-4)

    print("KERNEL_OK")
</pallas_src>

<mosaic_0001>
module attributes {stable_mosaic.version = 11 : i64} {
  func.func @_mlp_kernel(%arg0: i32, %arg1: memref<4x128xf32, #tpu.memory_space<vmem>>, %arg2: memref<128x4xf32, #tpu.memory_space<vmem>>, %arg3: memref<128x1xf32, #tpu.memory_space<vmem>>, %arg4: memref<128x128xf32, #tpu.memory_space<vmem>>, %arg5: memref<128x1xf32, #tpu.memory_space<vmem>>, %arg6: memref<2x128xf32, #tpu.memory_space<vmem>>, %arg7: memref<2x1xf32, #tpu.memory_space<vmem>>, %arg8: memref<2x128xf32, #tpu.memory_space<vmem>>) attributes {dimension_semantics = [#tpu.dimension_semantics<parallel>], iteration_bounds = array<i64: 1>, scalar_prefetch = 0 : i64, scratch_operands = 0 : i64, tpu.core_type = #tpu.core_type<tc>, window_params = [{transform_indices = @transform_0, window_bounds = array<i64: 4, 128>}, {pipeline_mode = #tpu.pipeline_mode<synchronous>, transform_indices = @transform_1, window_bounds = array<i64: 128, 4>}, {pipeline_mode = #tpu.pipeline_mode<synchronous>, transform_indices = @transform_2, window_bounds = array<i64: 128, 1>}, {pipeline_mode = #tpu.pipeline_mode<synchronous>, transform_indices = @transform_3, window_bounds = array<i64: 128, 128>}, {pipeline_mode = #tpu.pipeline_mode<synchronous>, transform_indices = @transform_4, window_bounds = array<i64: 128, 1>}, {pipeline_mode = #tpu.pipeline_mode<synchronous>, transform_indices = @transform_5, window_bounds = array<i64: 2, 128>}, {pipeline_mode = #tpu.pipeline_mode<synchronous>, transform_indices = @transform_6, window_bounds = array<i64: 2, 1>}, {transform_indices = @transform_7, window_bounds = array<i64: 2, 128>}]} {
    %c0 = arith.constant 0 : index
    %c0_0 = arith.constant 0 : index
    %0 = vector.load %arg1[%c0, %c0_0] : memref<4x128xf32, #tpu.memory_space<vmem>>, vector<4x128xf32>
    %c0_1 = arith.constant 0 : index
    %c0_2 = arith.constant 0 : index
    %1 = vector.load %arg2[%c0_1, %c0_2] : memref<128x4xf32, #tpu.memory_space<vmem>>, vector<128x4xf32>
    %2 = vector.extract_strided_slice %1 {offsets = [0, 0], sizes = [128, 1], strides = [1, 1]} : vector<128x4xf32> to vector<128x1xf32>
    %3 = vector.extract_strided_slice %0 {offsets = [0, 0], sizes = [1, 128], strides = [1, 1]} : vector<4x128xf32> to vector<1x128xf32>
    %4 = vector.broadcast %2 : vector<128x1xf32> to vector<128x128xf32>
    %5 = vector.broadcast %3 : vector<1x128xf32> to vector<128x128xf32>
    %6 = arith.mulf %4, %5 : vector<128x128xf32>
    %7 = vector.extract_strided_slice %1 {offsets = [0, 1], sizes = [128, 1], strides = [1, 1]} : vector<128x4xf32> to vector<128x1xf32>
    %8 = vector.extract_strided_slice %0 {offsets = [1, 0], sizes = [1, 128], strides = [1, 1]} : vector<4x128xf32> to vector<1x128xf32>
    %9 = vector.broadcast %7 : vector<128x1xf32> to vector<128x128xf32>
    %10 = vector.broadcast %8 : vector<1x128xf32> to vector<128x128xf32>
    %11 = arith.mulf %9, %10 : vector<128x128xf32>
    %12 = arith.addf %6, %11 : vector<128x128xf32>
    %13 = vector.extract_strided_slice %1 {offsets = [0, 2], sizes = [128, 1], strides = [1, 1]} : vector<128x4xf32> to vector<128x1xf32>
    %14 = vector.extract_strided_slice %0 {offsets = [2, 0], sizes = [1, 128], strides = [1, 1]} : vector<4x128xf32> to vector<1x128xf32>
    %15 = vector.broadcast %13 : vector<128x1xf32> to vector<128x128xf32>
    %16 = vector.broadcast %14 : vector<1x128xf32> to vector<128x128xf32>
    %17 = arith.mulf %15, %16 : vector<128x128xf32>
    %18 = arith.addf %12, %17 : vector<128x128xf32>
    %19 = vector.extract_strided_slice %1 {offsets = [0, 3], sizes = [128, 1], strides = [1, 1]} : vector<128x4xf32> to vector<128x1xf32>
    %20 = vector.extract_strided_slice %0 {offsets = [3, 0], sizes = [1, 128], strides = [1, 1]} : vector<4x128xf32> to vector<1x128xf32>
    %21 = vector.broadcast %19 : vector<128x1xf32> to vector<128x128xf32>
    %22 = vector.broadcast %20 : vector<1x128xf32> to vector<128x128xf32>
    %23 = arith.mulf %21, %22 : vector<128x128xf32>
    %24 = arith.addf %18, %23 : vector<128x128xf32>
    %c0_3 = arith.constant 0 : index
    %c0_4 = arith.constant 0 : index
    %25 = vector.load %arg3[%c0_3, %c0_4] : memref<128x1xf32, #tpu.memory_space<vmem>>, vector<128x1xf32>
    %26 = vector.broadcast %25 : vector<128x1xf32> to vector<128x128xf32>
    %27 = arith.addf %24, %26 : vector<128x128xf32>
    %cst = arith.constant 0.000000e+00 : f32
    %28 = vector.broadcast %cst : f32 to vector<128x128xf32>
    %29 = arith.maximumf %27, %28 : vector<128x128xf32>
    %c0_5 = arith.constant 0 : index
    %c0_6 = arith.constant 0 : index
    %30 = vector.load %arg4[%c0_5, %c0_6] : memref<128x128xf32, #tpu.memory_space<vmem>>, vector<128x128xf32>
    %cst_7 = arith.constant dense<0.000000e+00> : vector<128x128xf32>
    %31 = tpu.matmul %30, %29, %cst_7 {dimension_numbers = #tpu.dot_dimension_numbers<[1], [0], [0], [1], [0, 0, 1, 1], [], []>} : vector<128x128xf32>, vector<128x128xf32>, vector<128x128xf32> -> vector<128x128xf32>
    %c0_8 = arith.constant 0 : index
    %c0_9 = arith.constant 0 : index
    %32 = vector.load %arg5[%c0_8, %c0_9] : memref<128x1xf32, #tpu.memory_space<vmem>>, vector<128x1xf32>
    %33 = vector.broadcast %32 : vector<128x1xf32> to vector<128x128xf32>
    %34 = arith.addf %31, %33 : vector<128x128xf32>
    %cst_10 = arith.constant 0.000000e+00 : f32
    %35 = vector.broadcast %cst_10 : f32 to vector<128x128xf32>
    %36 = arith.maximumf %34, %35 : vector<128x128xf32>
    %c0_11 = arith.constant 0 : index
    %c0_12 = arith.constant 0 : index
    %37 = vector.load %arg6[%c0_11, %c0_12] : memref<2x128xf32, #tpu.memory_space<vmem>>, vector<2x128xf32>
    %cst_13 = arith.constant dense<0.000000e+00> : vector<2x128xf32>
    %38 = tpu.matmul %37, %36, %cst_13 {dimension_numbers = #tpu.dot_dimension_numbers<[1], [0], [0], [1], [0, 0, 1, 1], [], []>} : vector<2x128xf32>, vector<128x128xf32>, vector<2x128xf32> -> vector<2x128xf32>
    %c0_14 = arith.constant 0 : index
    %c0_15 = arith.constant 0 : index
    %39 = vector.load %arg7[%c0_14, %c0_15] : memref<2x1xf32, #tpu.memory_space<vmem>>, vector<2x1xf32>
    %40 = vector.broadcast %39 : vector<2x1xf32> to vector<2x128xf32>
    %41 = arith.addf %38, %40 : vector<2x128xf32>
    %c0_16 = arith.constant 0 : index
    %c0_17 = arith.constant 0 : index
    %42 = vector.load %arg8[%c0_16, %c0_17] : memref<2x128xf32, #tpu.memory_space<vmem>>, vector<2x128xf32>
    tpu.vector_store %arg8[%c0_16, %c0_17], %41 {strides = array<i32>} : memref<2x128xf32, #tpu.memory_space<vmem>>, vector<2x128xf32>,
    return
  }
  func.func @transform_0(%arg0: i32) -> (i32, i32) {
    %c0_i32 = arith.constant 0 : i32
    %c0_i32_0 = arith.constant 0 : i32
    return %c0_i32, %arg0 : i32, i32
  }
  func.func @transform_1(%arg0: i32) -> (i32, i32) {
    %c0_i32 = arith.constant 0 : i32
    %c0_i32_0 = arith.constant 0 : i32
    %c0_i32_1 = arith.constant 0 : i32
    return %c0_i32, %c0_i32_0 : i32, i32
  }
  func.func @transform_2(%arg0: i32) -> (i32, i32) {
    %c0_i32 = arith.constant 0 : i32
    %c0_i32_0 = arith.constant 0 : i32
    %c0_i32_1 = arith.constant 0 : i32
    return %c0_i32, %c0_i32_0 : i32, i32
  }
  func.func @transform_3(%arg0: i32) -> (i32, i32) {
    %c0_i32 = arith.constant 0 : i32
    %c0_i32_0 = arith.constant 0 : i32
    %c0_i32_1 = arith.constant 0 : i32
    return %c0_i32, %c0_i32_0 : i32, i32
  }
  func.func @transform_4(%arg0: i32) -> (i32, i32) {
    %c0_i32 = arith.constant 0 : i32
    %c0_i32_0 = arith.constant 0 : i32
    %c0_i32_1 = arith.constant 0 : i32
    return %c0_i32, %c0_i32_0 : i32, i32
  }
  func.func @transform_5(%arg0: i32) -> (i32, i32) {
    %c0_i32 = arith.constant 0 : i32
    %c0_i32_0 = arith.constant 0 : i32
    %c0_i32_1 = arith.constant 0 : i32
    return %c0_i32, %c0_i32_0 : i32, i32
  }
  func.func @transform_6(%arg0: i32) -> (i32, i32) {
    %c0_i32 = arith.constant 0 : i32
    %c0_i32_0 = arith.constant 0 : i32
    %c0_i32_1 = arith.constant 0 : i32
    return %c0_i32, %c0_i32_0 : i32, i32
  }
  func.func @transform_7(%arg0: i32) -> (i32, i32) {
    %c0_i32 = arith.constant 0 : i32
    %c0_i32_0 = arith.constant 0 : i32
    return %c0_i32, %arg0 : i32, i32
  }
}

</mosaic_0001>

<llo_original>
// kernel: dnn_forward.1
$region0: #{dnn_forward.1}
  #allocation0 [shape = 'u32[]', space=smem, size = 0x4, offset = 0x4, fixed_abs, tag = 'smem constant byte address 0x4 - core index']
  #allocation1 [shape = 'u32[144,128]{1,0:T(1,128)}', space=vmem, size = 0x12000, scoped, tag = 'internal scratch']
  %s0 = inlined_call_operand.vmem [shape: f32[4,128], index: 0, kind: input, shape index: {}]
  %s1 = inlined_call_operand.vmem [shape: f32[128,4], index: 1, kind: input, shape index: {}]
  %s2 = inlined_call_operand.vmem [shape: f32[128,1], index: 2, kind: input, shape index: {}]
  %s3 = inlined_call_operand.vmem [shape: f32[128,128], index: 3, kind: input, shape index: {}]
  %s4 = inlined_call_operand.vmem [shape: f32[128,1], index: 4, kind: input, shape index: {}]
  %s5 = inlined_call_operand.vmem [shape: f32[2,128], index: 5, kind: input, shape index: {}]
  %s6 = inlined_call_operand.vmem [shape: f32[2,1], index: 6, kind: input, shape index: {}]
  %s7 = inlined_call_operand.vmem [shape: f32[2,128], index: 7, kind: output, shape index: {}]
  %s8 = sld [smem:[#allocation0]]
  $region38: #{dnn_forward.1} parent=0
    _
  %s10 = ssub.s32 1, %s8
  %s11 = scalar_select 0, %s10, %s8
  // Predicated region
  $region2: #{dnn_forward.1} parent=0 // pred_check
    _
  $region3: #{dnn_forward.1} parent=0 // pred_check_branch
    %13 = sbr.rel (0) target = $region5
  $region4: #{dnn_forward.1} parent=0 // pred_region
    _
  $region5: #{dnn_forward.1} parent=0 // pred_fallthru
    _
  // Predicated region
  $region6: #{dnn_forward.1} parent=0 // pred_check
    _
  $region7: #{dnn_forward.1} parent=0 // pred_check_branch
    %15 = sbr.rel (0) target = $region9
  $region8: #{dnn_forward.1} parent=0 // pred_region
    _
  $region9: #{dnn_forward.1} parent=0 // pred_fallthru
    _
  // Predicated region
  $region10: #{dnn_forward.1} parent=0 // pred_check
    _
  $region11: #{dnn_forward.1} parent=0 // pred_check_branch
    %17 = sbr.rel (0) target = $region13
  $region12: #{dnn_forward.1} parent=0 // pred_region
    _
  $region13: #{dnn_forward.1} parent=0 // pred_fallthru
    _
  // Predicated region
  $region14: #{dnn_forward.1} parent=0 // pred_check
    _
  $region15: #{dnn_forward.1} parent=0 // pred_check_branch
    %19 = sbr.rel (0) target = $region17
  $region16: #{dnn_forward.1} parent=0 // pred_region
    _
  $region17: #{dnn_forward.1} parent=0 // pred_fallthru
    _
  // Predicated region
  $region18: #{dnn_forward.1} parent=0 // pred_check
    _
  $region19: #{dnn_forward.1} parent=0 // pred_check_branch
    %21 = sbr.rel (0) target = $region21
  $region20: #{dnn_forward.1} parent=0 // pred_region
    _
  $region21: #{dnn_forward.1} parent=0 // pred_fallthru
    _
  // Predicated region
  $region22: #{dnn_forward.1} parent=0 // pred_check
    _
  $region23: #{dnn_forward.1} parent=0 // pred_check_branch
    %23 = sbr.rel (0) target = $region25
  $region24: #{dnn_forward.1} parent=0 // pred_region
    _
  $region25: #{dnn_forward.1} parent=0 // pred_fallthru
    _
  // Predicated region
  $region26: #{dnn_forward.1} parent=0 // pred_check
    _
  $region27: #{dnn_forward.1} parent=0 // pred_check_branch
    %25 = sbr.rel (0) target = $region29
  $region28: #{dnn_forward.1} parent=0 // pred_region
    _
  $region29: #{dnn_forward.1} parent=0 // pred_fallthru
    _
  %v26 = vld [vmem:[%s0] sm:$0xf]
  %v27 = vld [vmem:[%s1] sm:$0xff]
  %v28 = vld [vmem:[%s1 + $0x8] sm:$0xff]
  %v29 = vld [vmem:[%s1 + $0x10] sm:$0xff]
  %v30 = vld [vmem:[%s1 + $0x18] sm:$0xff]
  %v31 = vld [vmem:[%s1 + $0x20] sm:$0xff]
  %v32 = vld [vmem:[%s1 + $0x28] sm:$0xff]
  %v33 = vld [vmem:[%s1 + $0x30] sm:$0xff]
  %v34 = vld [vmem:[%s1 + $0x38] sm:$0xff]
  %v35 = vld [vmem:[%s1 + $0x40] sm:$0xff]
  %v36 = vld [vmem:[%s1 + $0x48] sm:$0xff]
  %v37 = vld [vmem:[%s1 + $0x50] sm:$0xff]
  %v38 = vld [vmem:[%s1 + $0x58] sm:$0xff]
  %v39 = vld [vmem:[%s1 + $0x60] sm:$0xff]
  %v40 = vld [vmem:[%s1 + $0x68] sm:$0xff]
  %v41 = vld [vmem:[%s1 + $0x70] sm:$0xff]
  %v42 = vld [vmem:[%s1 + $0x78] sm:$0xff]
  %44 = vset.pattern.permute.xlu0 0
  %45 = vperm.xlu0 %44, %v27
  %v46 = vpop.permute.xlu0 %45
  %49 = vset.pattern.permute.xlu0 0
  %50 = vperm.xlu0 %49, %v28
  %v51 = vpop.permute.xlu0 %50
  %54 = vset.pattern.permute.xlu0 0
  %55 = vperm.xlu0 %54, %v29
  %v56 = vpop.permute.xlu0 %55
  %59 = vset.pattern.permute.xlu0 0
  %60 = vperm.xlu0 %59, %v30
  %v61 = vpop.permute.xlu0 %60
  %64 = vset.pattern.permute.xlu0 0
  %65 = vperm.xlu0 %64, %v31
  %v66 = vpop.permute.xlu0 %65
  %69 = vset.pattern.permute.xlu0 0
  %70 = vperm.xlu0 %69, %v32
  %v71 = vpop.permute.xlu0 %70
  %74 = vset.pattern.permute.xlu0 0
  %75 = vperm.xlu0 %74, %v33
  %v76 = vpop.permute.xlu0 %75
  %79 = vset.pattern.permute.xlu0 0
  %80 = vperm.xlu0 %79, %v34
  %v81 = vpop.permute.xlu0 %80
  %84 = vset.pattern.permute.xlu0 0
  %85 = vperm.xlu0 %84, %v35
  %v86 = vpop.permute.xlu0 %85
  %89 = vset.pattern.permute.xlu0 0
  %90 = vperm.xlu0 %89, %v36
  %v91 = vpop.permute.xlu0 %90
  %94 = vset.pattern.permute.xlu0 0
  %95 = vperm.xlu0 %94, %v37
  %v96 = vpop.permute.xlu0 %95
  %99 = vset.pattern.permute.xlu0 0
  %100 = vperm.xlu0 %99, %v38
  %v101 = vpop.permute.xlu0 %100
  %104 = vset.pattern.permute.xlu0 0
  %105 = vperm.xlu0 %104, %v39
  %v106 = vpop.permute.xlu0 %105
  %109 = vset.pattern.permute.xlu0 0
  %110 = vperm.xlu0 %109, %v40
  %v111 = vpop.permute.xlu0 %110
  %114 = vset.pattern.permute.xlu0 0
  %115 = vperm.xlu0 %114, %v41
  %v116 = vpop.permute.xlu0 %115
  %119 = vset.pattern.permute.xlu0 0
  %120 = vperm.xlu0 %119, %v42
  %v121 = vpop.permute.xlu0 %120
  %v123 = vlaneseq
  %v124 = vshrl.u32 %v123, 7
  %v125 = vsub.s32 0, %v124
  %v126 = vrot.slane %v26, %v125
  %v127 = vmul.f32 %v46, %v126
  %v128 = vmul.f32 %v51, %v126
  %v129 = vmul.f32 %v56, %v126
  %v130 = vmul.f32 %v61, %v126
  %v131 = vmul.f32 %v66, %v126
  %v132 = vmul.f32 %v71, %v126
  %v133 = vmul.f32 %v76, %v126
  %v134 = vmul.f32 %v81, %v126
  %v135 = vmul.f32 %v86, %v126
  %v136 = vmul.f32 %v91, %v126
  %v137 = vmul.f32 %v96, %v126
  %v138 = vmul.f32 %v101, %v126
  %v139 = vmul.f32 %v106, %v126
  %v140 = vmul.f32 %v111, %v126
  %v141 = vmul.f32 %v116, %v126
  %v142 = vmul.f32 %v121, %v126
  %143 = vset.pattern.permute.xlu0 1
  %144 = vperm.xlu0 %143, %v27
  %v145 = vpop.permute.xlu0 %144
  %147 = vset.pattern.permute.xlu0 1
  %148 = vperm.xlu0 %147, %v28
  %v149 = vpop.permute.xlu0 %148
  %151 = vset.pattern.permute.xlu0 1
  %152 = vperm.xlu0 %151, %v29
  %v153 = vpop.permute.xlu0 %152
  %155 = vset.pattern.permute.xlu0 1
  %156 = vperm.xlu0 %155, %v30
  %v157 = vpop.permute.xlu0 %156
  %159 = vset.pattern.permute.xlu0 1
  %160 = vperm.xlu0 %159, %v31
  %v161 = vpop.permute.xlu0 %160
  %163 = vset.pattern.permute.xlu0 1
  %164 = vperm.xlu0 %163, %v32
  %v165 = vpop.permute.xlu0 %164
  %167 = vset.pattern.permute.xlu0 1
  %168 = vperm.xlu0 %167, %v33
  %v169 = vpop.permute.xlu0 %168
  %171 = vset.pattern.permute.xlu0 1
  %172 = vperm.xlu0 %171, %v34
  %v173 = vpop.permute.xlu0 %172
  %175 = vset.pattern.permute.xlu0 1
  %176 = vperm.xlu0 %175, %v35
  %v177 = vpop.permute.xlu0 %176
  %179 = vset.pattern.permute.xlu0 1
  %180 = vperm.xlu0 %179, %v36
  %v181 = vpop.permute.xlu0 %180
  %183 = vset.pattern.permute.xlu0 1
  %184 = vperm.xlu0 %183, %v37
  %v185 = vpop.permute.xlu0 %184
  %187 = vset.pattern.permute.xlu0 1
  %188 = vperm.xlu0 %187, %v38
  %v189 = vpop.permute.xlu0 %188
  %191 = vset.pattern.permute.xlu0 1
  %192 = vperm.xlu0 %191, %v39
  %v193 = vpop.permute.xlu0 %192
  %195 = vset.pattern.permute.xlu0 1
  %196 = vperm.xlu0 %195, %v40
  %v197 = vpop.permute.xlu0 %196
  %199 = vset.pattern.permute.xlu0 1
  %200 = vperm.xlu0 %199, %v41
  %v201 = vpop.permute.xlu0 %200
  %203 = vset.pattern.permute.xlu0 1
  %204 = vperm.xlu0 %203, %v42
  %v205 = vpop.permute.xlu0 %204
  %v207 = vlaneseq
  %v208 = vshrl.u32 %v207, 7
  %v209 = vsub.s32 1, %v208
  %v210 = vrot.slane %v26, %v209
  %v211 = vmul.f32 %v145, %v210
  %v212 = vmul.f32 %v149, %v210
  %v213 = vmul.f32 %v153, %v210
  %v214 = vmul.f32 %v157, %v210
  %v215 = vmul.f32 %v161, %v210
  %v216 = vmul.f32 %v165, %v210
  %v217 = vmul.f32 %v169, %v210
  %v218 = vmul.f32 %v173, %v210
  %v219 = vmul.f32 %v177, %v210
  %v220 = vmul.f32 %v181, %v210
  %v221 = vmul.f32 %v185, %v210
  %v222 = vmul.f32 %v189, %v210
  %v223 = vmul.f32 %v193, %v210
  %v224 = vmul.f32 %v197, %v210
  %v225 = vmul.f32 %v201, %v210
  %v226 = vmul.f32 %v205, %v210
  %v227 = vadd.f32 %v127, %v211
  %v228 = vadd.f32 %v128, %v212
  %v229 = vadd.f32 %v129, %v213
  %v230 = vadd.f32 %v130, %v214
  %v231 = vadd.f32 %v131, %v215
  %v232 = vadd.f32 %v132, %v216
  %v233 = vadd.f32 %v133, %v217
  %v234 = vadd.f32 %v134, %v218
  %v235 = vadd.f32 %v135, %v219
  %v236 = vadd.f32 %v136, %v220
  %v237 = vadd.f32 %v137, %v221
  %v238 = vadd.f32 %v138, %v222
  %v239 = vadd.f32 %v139, %v223
  %v240 = vadd.f32 %v140, %v224
  %v241 = vadd.f32 %v141, %v225
  %v242 = vadd.f32 %v142, %v226
  %243 = vset.pattern.permute.xlu0 2
  %244 = vperm.xlu0 %243, %v27
  %v245 = vpop.permute.xlu0 %244
  %247 = vset.pattern.permute.xlu0 2
  %248 = vperm.xlu0 %247, %v28
  %v249 = vpop.permute.xlu0 %248
  %251 = vset.pattern.permute.xlu0 2
  %252 = vperm.xlu0 %251, %v29
  %v253 = vpop.permute.xlu0 %252
  %255 = vset.pattern.permute.xlu0 2
  %256 = vperm.xlu0 %255, %v30
  %v257 = vpop.permute.xlu0 %256
  %259 = vset.pattern.permute.xlu0 2
  %260 = vperm.xlu0 %259, %v31
  %v261 = vpop.permute.xlu0 %260
  %263 = vset.pattern.permute.xlu0 2
  %264 = vperm.xlu0 %263, %v32
  %v265 = vpop.permute.xlu0 %264
  %267 = vset.pattern.permute.xlu0 2
  %268 = vperm.xlu0 %267, %v33
  %v269 = vpop.permute.xlu0 %268
  %271 = vset.pattern.permute.xlu0 2
  %272 = vperm.xlu0 %271, %v34
  %v273 = vpop.permute.xlu0 %272
  %275 = vset.pattern.permute.xlu0 2
  %276 = vperm.xlu0 %275, %v35
  %v277 = vpop.permute.xlu0 %276
  %279 = vset.pattern.permute.xlu0 2
  %280 = vperm.xlu0 %279, %v36
  %v281 = vpop.permute.xlu0 %280
  %283 = vset.pattern.permute.xlu0 2
  %284 = vperm.xlu0 %283, %v37
  %v285 = vpop.permute.xlu0 %284
  %287 = vset.pattern.permute.xlu0 2
  %288 = vperm.xlu0 %287, %v38
  %v289 = vpop.permute.xlu0 %288
  %291 = vset.pattern.permute.xlu0 2
  %292 = vperm.xlu0 %291, %v39
  %v293 = vpop.permute.xlu0 %292
  %295 = vset.pattern.permute.xlu0 2
  %296 = vperm.xlu0 %295, %v40
  %v297 = vpop.permute.xlu0 %296
  %299 = vset.pattern.permute.xlu0 2
  %300 = vperm.xlu0 %299, %v41
  %v301 = vpop.permute.xlu0 %300
  %303 = vset.pattern.permute.xlu0 2
  %304 = vperm.xlu0 %303, %v42
  %v305 = vpop.permute.xlu0 %304
  %v307 = vlaneseq
  %v308 = vshrl.u32 %v307, 7
  %v309 = vsub.s32 2, %v308
  %v310 = vrot.slane %v26, %v309
  %v311 = vmul.f32 %v245, %v310
  %v312 = vmul.f32 %v249, %v310
  %v313 = vmul.f32 %v253, %v310
  %v314 = vmul.f32 %v257, %v310
  %v315 = vmul.f32 %v261, %v310
  %v316 = vmul.f32 %v265, %v310
  %v317 = vmul.f32 %v269, %v310
  %v318 = vmul.f32 %v273, %v310
  %v319 = vmul.f32 %v277, %v310
  %v320 = vmul.f32 %v281, %v310
  %v321 = vmul.f32 %v285, %v310
  %v322 = vmul.f32 %v289, %v310
  %v323 = vmul.f32 %v293, %v310
  %v324 = vmul.f32 %v297, %v310
  %v325 = vmul.f32 %v301, %v310
  %v326 = vmul.f32 %v305, %v310
  %v327 = vadd.f32 %v227, %v311
  %v328 = vadd.f32 %v228, %v312
  %v329 = vadd.f32 %v229, %v313
  %v330 = vadd.f32 %v230, %v314
  %v331 = vadd.f32 %v231, %v315
  %v332 = vadd.f32 %v232, %v316
  %v333 = vadd.f32 %v233, %v317
  %v334 = vadd.f32 %v234, %v318
  %v335 = vadd.f32 %v235, %v319
  %v336 = vadd.f32 %v236, %v320
  %v337 = vadd.f32 %v237, %v321
  %v338 = vadd.f32 %v238, %v322
  %v339 = vadd.f32 %v239, %v323
  %v340 = vadd.f32 %v240, %v324
  %v341 = vadd.f32 %v241, %v325
  %v342 = vadd.f32 %v242, %v326
  %343 = vset.pattern.permute.xlu0 3
  %344 = vperm.xlu0 %343, %v27
  %v345 = vpop.permute.xlu0 %344
  %347 = vset.pattern.permute.xlu0 3
  %348 = vperm.xlu0 %347, %v28
  %v349 = vpop.permute.xlu0 %348
  %351 = vset.pattern.permute.xlu0 3
  %352 = vperm.xlu0 %351, %v29
  %v353 = vpop.permute.xlu0 %352
  %355 = vset.pattern.permute.xlu0 3
  %356 = vperm.xlu0 %355, %v30
  %v357 = vpop.permute.xlu0 %356
  %359 = vset.pattern.permute.xlu0 3
  %360 = vperm.xlu0 %359, %v31
  %v361 = vpop.permute.xlu0 %360
  %363 = vset.pattern.permute.xlu0 3
  %364 = vperm.xlu0 %363, %v32
  %v365 = vpop.permute.xlu0 %364
  %367 = vset.pattern.permute.xlu0 3
  %368 = vperm.xlu0 %367, %v33
  %v369 = vpop.permute.xlu0 %368
  %371 = vset.pattern.permute.xlu0 3
  %372 = vperm.xlu0 %371, %v34
  %v373 = vpop.permute.xlu0 %372
  %375 = vset.pattern.permute.xlu0 3
  %376 = vperm.xlu0 %375, %v35
  %v377 = vpop.permute.xlu0 %376
  %379 = vset.pattern.permute.xlu0 3
  %380 = vperm.xlu0 %379, %v36
  %v381 = vpop.permute.xlu0 %380
  %383 = vset.pattern.permute.xlu0 3
  %384 = vperm.xlu0 %383, %v37
  %v385 = vpop.permute.xlu0 %384
  %387 = vset.pattern.permute.xlu0 3
  %388 = vperm.xlu0 %387, %v38
  %v389 = vpop.permute.xlu0 %388
  %391 = vset.pattern.permute.xlu0 3
  %392 = vperm.xlu0 %391, %v39
  %v393 = vpop.permute.xlu0 %392
  %395 = vset.pattern.permute.xlu0 3
  %396 = vperm.xlu0 %395, %v40
  %v397 = vpop.permute.xlu0 %396
  %399 = vset.pattern.permute.xlu0 3
  %400 = vperm.xlu0 %399, %v41
  %v401 = vpop.permute.xlu0 %400
  %403 = vset.pattern.permute.xlu0 3
  %404 = vperm.xlu0 %403, %v42
  %v405 = vpop.permute.xlu0 %404
  %v407 = vlaneseq
  %v408 = vshrl.u32 %v407, 7
  %v409 = vsub.s32 3, %v408
  %v410 = vrot.slane %v26, %v409
  %v411 = vmul.f32 %v345, %v410
  %v412 = vmul.f32 %v349, %v410
  %v413 = vmul.f32 %v353, %v410
  %v414 = vmul.f32 %v357, %v410
  %v415 = vmul.f32 %v361, %v410
  %v416 = vmul.f32 %v365, %v410
  %v417 = vmul.f32 %v369, %v410
  %v418 = vmul.f32 %v373, %v410
  %v419 = vmul.f32 %v377, %v410
  %v420 = vmul.f32 %v381, %v410
  %v421 = vmul.f32 %v385, %v410
  %v422 = vmul.f32 %v389, %v410
  %v423 = vmul.f32 %v393, %v410
  %v424 = vmul.f32 %v397, %v410
  %v425 = vmul.f32 %v401, %v410
  %v426 = vmul.f32 %v405, %v410
  %v427 = vadd.f32 %v327, %v411
  %v428 = vadd.f32 %v328, %v412
  %v429 = vadd.f32 %v329, %v413
  %v430 = vadd.f32 %v330, %v414
  %v431 = vadd.f32 %v331, %v415
  %v432 = vadd.f32 %v332, %v416
  %v433 = vadd.f32 %v333, %v417
  %v434 = vadd.f32 %v334, %v418
  %v435 = vadd.f32 %v335, %v419
  %v436 = vadd.f32 %v336, %v420
  %v437 = vadd.f32 %v337, %v421
  %v438 = vadd.f32 %v338, %v422
  %v439 = vadd.f32 %v339, %v423
  %v440 = vadd.f32 %v340, %v424
  %v441 = vadd.f32 %v341, %v425
  %v442 = vadd.f32 %v342, %v426
  %v443 = vld [vmem:[%s2] sm:$0xff]
  %v444 = vld [vmem:[%s2 + $0x8] sm:$0xff]
  %v445 = vld [vmem:[%s2 + $0x10] sm:$0xff]
  %v446 = vld [vmem:[%s2 + $0x18] sm:$0xff]
  %v447 = vld [vmem:[%s2 + $0x20] sm:$0xff]
  %v448 = vld [vmem:[%s2 + $0x28] sm:$0xff]
  %v449 = vld [vmem:[%s2 + $0x30] sm:$0xff]
  %v450 = vld [vmem:[%s2 + $0x38] sm:$0xff]
  %v451 = vld [vmem:[%s2 + $0x40] sm:$0xff]
  %v452 = vld [vmem:[%s2 + $0x48] sm:$0xff]
  %v453 = vld [vmem:[%s2 + $0x50] sm:$0xff]
  %v454 = vld [vmem:[%s2 + $0x58] sm:$0xff]
  %v455 = vld [vmem:[%s2 + $0x60] sm:$0xff]
  %v456 = vld [vmem:[%s2 + $0x68] sm:$0xff]
  %v457 = vld [vmem:[%s2 + $0x70] sm:$0xff]
  %v458 = vld [vmem:[%s2 + $0x78] sm:$0xff]
  %460 = vset.pattern.permute.xlu0 0
  %461 = vperm.xlu0 %460, %v443
  %v462 = vpop.permute.xlu0 %461
  %465 = vset.pattern.permute.xlu0 0
  %466 = vperm.xlu0 %465, %v444
  %v467 = vpop.permute.xlu0 %466
  %470 = vset.pattern.permute.xlu0 0
  %471 = vperm.xlu0 %470, %v445
  %v472 = vpop.permute.xlu0 %471
  %475 = vset.pattern.permute.xlu0 0
  %476 = vperm.xlu0 %475, %v446
  %v477 = vpop.permute.xlu0 %476
  %480 = vset.pattern.permute.xlu0 0
  %481 = vperm.xlu0 %480, %v447
  %v482 = vpop.permute.xlu0 %481
  %485 = vset.pattern.permute.xlu0 0
  %486 = vperm.xlu0 %485, %v448
  %v487 = vpop.permute.xlu0 %486
  %490 = vset.pattern.permute.xlu0 0
  %491 = vperm.xlu0 %490, %v449
  %v492 = vpop.permute.xlu0 %491
  %495 = vset.pattern.permute.xlu0 0
  %496 = vperm.xlu0 %495, %v450
  %v497 = vpop.permute.xlu0 %496
  %500 = vset.pattern.permute.xlu0 0
  %501 = vperm.xlu0 %500, %v451
  %v502 = vpop.permute.xlu0 %501
  %505 = vset.pattern.permute.xlu0 0
  %506 = vperm.xlu0 %505, %v452
  %v507 = vpop.permute.xlu0 %506
  %510 = vset.pattern.permute.xlu0 0
  %511 = vperm.xlu0 %510, %v453
  %v512 = vpop.permute.xlu0 %511
  %515 = vset.pattern.permute.xlu0 0
  %516 = vperm.xlu0 %515, %v454
  %v517 = vpop.permute.xlu0 %516
  %520 = vset.pattern.permute.xlu0 0
  %521 = vperm.xlu0 %520, %v455
  %v522 = vpop.permute.xlu0 %521
  %525 = vset.pattern.permute.xlu0 0
  %526 = vperm.xlu0 %525, %v456
  %v527 = vpop.permute.xlu0 %526
  %530 = vset.pattern.permute.xlu0 0
  %531 = vperm.xlu0 %530, %v457
  %v532 = vpop.permute.xlu0 %531
  %535 = vset.pattern.permute.xlu0 0
  %536 = vperm.xlu0 %535, %v458
  %v537 = vpop.permute.xlu0 %536
  %v539 = vadd.f32 %v427, %v462
  %v540 = vadd.f32 %v428, %v467
  %v541 = vadd.f32 %v429, %v472
  %v542 = vadd.f32 %v430, %v477
  %v543 = vadd.f32 %v431, %v482
  %v544 = vadd.f32 %v432, %v487
  %v545 = vadd.f32 %v433, %v492
  %v546 = vadd.f32 %v434, %v497
  %v547 = vadd.f32 %v435, %v502
  %v548 = vadd.f32 %v436, %v507
  %v549 = vadd.f32 %v437, %v512
  %v550 = vadd.f32 %v438, %v517
  %v551 = vadd.f32 %v439, %v522
  %v552 = vadd.f32 %v440, %v527
  %v553 = vadd.f32 %v441, %v532
  %v554 = vadd.f32 %v442, %v537
  %v555 = vmax.f32 %v539, 0.0
  %v556 = vmax.f32 %v540, 0.0
  %v557 = vmax.f32 %v541, 0.0
  %v558 = vmax.f32 %v542, 0.0
  %v559 = vmax.f32 %v543, 0.0
  %v560 = vmax.f32 %v544, 0.0
  %v561 = vmax.f32 %v545, 0.0
  %v562 = vmax.f32 %v546, 0.0
  %v563 = vmax.f32 %v547, 0.0
  %v564 = vmax.f32 %v548, 0.0
  %v565 = vmax.f32 %v549, 0.0
  %v566 = vmax.f32 %v550, 0.0
  %v567 = vmax.f32 %v551, 0.0
  %v568 = vmax.f32 %v552, 0.0
  %v569 = vmax.f32 %v553, 0.0
  %v570 = vmax.f32 %v554, 0.0
  %v571 = vld [vmem:[%s3] sm:$0xff]
  %v572 = vld [vmem:[%s3 + $0x8] sm:$0xff]
  %v573 = vld [vmem:[%s3 + $0x10] sm:$0xff]
  %v574 = vld [vmem:[%s3 + $0x18] sm:$0xff]
  %v575 = vld [vmem:[%s3 + $0x20] sm:$0xff]
  %v576 = vld [vmem:[%s3 + $0x28] sm:$0xff]
  %v577 = vld [vmem:[%s3 + $0x30] sm:$0xff]
  %v578 = vld [vmem:[%s3 + $0x38] sm:$0xff]
  %v579 = vld [vmem:[%s3 + $0x40] sm:$0xff]
  %v580 = vld [vmem:[%s3 + $0x48] sm:$0xff]
  %v581 = vld [vmem:[%s3 + $0x50] sm:$0xff]
  %v582 = vld [vmem:[%s3 + $0x58] sm:$0xff]
  %v583 = vld [vmem:[%s3 + $0x60] sm:$0xff]
  %v584 = vld [vmem:[%s3 + $0x68] sm:$0xff]
  %v585 = vld [vmem:[%s3 + $0x70] sm:$0xff]
  %v586 = vld [vmem:[%s3 + $0x78] sm:$0xff]
  %v587 = vld [vmem:[%s4] sm:$0xff]
  %v588 = vld [vmem:[%s4 + $0x8] sm:$0xff]
  %v589 = vld [vmem:[%s4 + $0x10] sm:$0xff]
  %v590 = vld [vmem:[%s4 + $0x18] sm:$0xff]
  %v591 = vld [vmem:[%s4 + $0x20] sm:$0xff]
  %v592 = vld [vmem:[%s4 + $0x28] sm:$0xff]
  %v593 = vld [vmem:[%s4 + $0x30] sm:$0xff]
  %v594 = vld [vmem:[%s4 + $0x38] sm:$0xff]
  %v595 = vld [vmem:[%s4 + $0x40] sm:$0xff]
  %v596 = vld [vmem:[%s4 + $0x48] sm:$0xff]
  %v597 = vld [vmem:[%s4 + $0x50] sm:$0xff]
  %v598 = vld [vmem:[%s4 + $0x58] sm:$0xff]
  %v599 = vld [vmem:[%s4 + $0x60] sm:$0xff]
  %v600 = vld [vmem:[%s4 + $0x68] sm:$0xff]
  %v601 = vld [vmem:[%s4 + $0x70] sm:$0xff]
  %v602 = vld [vmem:[%s4 + $0x78] sm:$0xff]
  %604 = vset.pattern.permute.xlu0 0
  %605 = vperm.xlu0 %604, %v587
  %v606 = vpop.permute.xlu0 %605
  %609 = vset.pattern.permute.xlu0 0
  %610 = vperm.xlu0 %609, %v588
  %v611 = vpop.permute.xlu0 %610
  %614 = vset.pattern.permute.xlu0 0
  %615 = vperm.xlu0 %614, %v589
  %v616 = vpop.permute.xlu0 %615
  %619 = vset.pattern.permute.xlu0 0
  %620 = vperm.xlu0 %619, %v590
  %v621 = vpop.permute.xlu0 %620
  %624 = vset.pattern.permute.xlu0 0
  %625 = vperm.xlu0 %624, %v591
  %v626 = vpop.permute.xlu0 %625
  %629 = vset.pattern.permute.xlu0 0
  %630 = vperm.xlu0 %629, %v592
  %v631 = vpop.permute.xlu0 %630
  %634 = vset.pattern.permute.xlu0 0
  %635 = vperm.xlu0 %634, %v593
  %v636 = vpop.permute.xlu0 %635
  %639 = vset.pattern.permute.xlu0 0
  %640 = vperm.xlu0 %639, %v594
  %v641 = vpop.permute.xlu0 %640
  %644 = vset.pattern.permute.xlu0 0
  %645 = vperm.xlu0 %644, %v595
  %v646 = vpop.permute.xlu0 %645
  %649 = vset.pattern.permute.xlu0 0
  %650 = vperm.xlu0 %649, %v596
  %v651 = vpop.permute.xlu0 %650
  %654 = vset.pattern.permute.xlu0 0
  %655 = vperm.xlu0 %654, %v597
  %v656 = vpop.permute.xlu0 %655
  %659 = vset.pattern.permute.xlu0 0
  %660 = vperm.xlu0 %659, %v598
  %v661 = vpop.permute.xlu0 %660
  %664 = vset.pattern.permute.xlu0 0
  %665 = vperm.xlu0 %664, %v599
  %v666 = vpop.permute.xlu0 %665
  %669 = vset.pattern.permute.xlu0 0
  %670 = vperm.xlu0 %669, %v600
  %v671 = vpop.permute.xlu0 %670
  %674 = vset.pattern.permute.xlu0 0
  %675 = vperm.xlu0 %674, %v601
  %v676 = vpop.permute.xlu0 %675
  %679 = vset.pattern.permute.xlu0 0
  %680 = vperm.xlu0 %679, %v602
  %v681 = vpop.permute.xlu0 %680
  %683 = vmatprep.subr.mxu0 0.0
  %684 = vmatpush1.msra.mxu0 %v570
  %685 = vmatprep.subr.mxu0 0.0
  %686 = vmatpush1.msra.mxu0 %v569
  %687 = vmatprep.subr.mxu0 0.0
  %688 = vmatpush1.msra.mxu0 %v568
  %689 = vmatprep.subr.mxu0 0.0
  %690 = vmatpush1.msra.mxu0 %v567
  %691 = vmatprep.subr.mxu0 0.0
  %692 = vmatpush1.msra.mxu0 %v566
  %693 = vmatprep.subr.mxu0 0.0
  %694 = vmatpush1.msra.mxu0 %v565
  %695 = vmatprep.subr.mxu0 0.0
  %696 = vmatpush1.msra.mxu0 %v564
  %697 = vmatprep.subr.mxu0 0.0
  %698 = vmatpush1.msra.mxu0 %v563
  %699 = vmatprep.subr.mxu0 0.0
  %700 = vmatpush1.msra.mxu0 %v562
  %701 = vmatprep.subr.mxu0 0.0
  %702 = vmatpush1.msra.mxu0 %v561
  %703 = vmatprep.subr.mxu0 0.0
  %704 = vmatpush1.msra.mxu0 %v560
  %705 = vmatprep.subr.mxu0 0.0
  %706 = vmatpush1.msra.mxu0 %v559
  %707 = vmatprep.subr.mxu0 0.0
  %708 = vmatpush1.msra.mxu0 %v558
  %709 = vmatprep.subr.mxu0 0.0
  %710 = vmatpush1.msra.mxu0 %v557
  %711 = vmatprep.subr.mxu0 0.0
  %712 = vmatpush1.msra.mxu0 %v556
  %713 = vmatprep.subr.mxu0 0.0
  %714 = vmatpush1.msra.mxu0 %v555
  %715 = vmatprep.subr.mxu0 0.0
  %716 = vmatpush2.msra.mxu0 0.0
  %717 = vmatprep.subr.mxu0 0.0
  %718 = vmatpush2.msra.mxu0 0.0
  %719 = vmatprep.subr.mxu0 0.0
  %720 = vmatpush2.msra.mxu0 0.0
  %721 = vmatprep.subr.mxu0 0.0
  %722 = vmatpush2.msra.mxu0 0.0
  %723 = vmatprep.subr.mxu0 0.0
  %724 = vmatpush2.msra.mxu0 0.0
  %725 = vmatprep.subr.mxu0 0.0
  %726 = vmatpush2.msra.mxu0 0.0
  %727 = vmatprep.subr.mxu0 0.0
  %728 = vmatpush2.msra.mxu0 0.0
  %729 = vmatprep.subr.mxu0 0.0
  %730 = vmatpush2.msra.mxu0 0.0
  %731 = vmatprep.subr.mxu0 0.0
  %732 = vmatpush2.msra.mxu0 0.0
  %733 = vmatprep.subr.mxu0 0.0
  %734 = vmatpush2.msra.mxu0 0.0
  %735 = vmatprep.subr.mxu0 0.0
  %736 = vmatpush2.msra.mxu0 0.0
  %737 = vmatprep.subr.mxu0 0.0
  %738 = vmatpush2.msra.mxu0 0.0
  %739 = vmatprep.subr.mxu0 0.0
  %740 = vmatpush2.msra.mxu0 0.0
  %741 = vmatprep.subr.mxu0 0.0
  %742 = vmatpush2.msra.mxu0 0.0
  %743 = vmatprep.subr.mxu0 0.0
  %744 = vmatpush2.msra.mxu0 0.0
  %745 = vmatprep.subr.mxu0 0.0
  %746 = vmatpush2.msra.mxu0 0.0
  %747 = vmatprep.mubr.f32.mxu0 0.0
  %748 = vmatmul.mubr.f32.gmra.mxu0 %v571
  %v749 = vpop.f32.mrf.mxu0
  %v750 = vadd.f32 %v606, %v749
  %v751 = vpop.f32.mrf.mxu0
  %752 = vmatprep.mubr.f32.mxu0 0.0
  %753 = vmatmul.mubr.f32.gmra.mxu0 %v572
  %v754 = vpop.f32.mrf.mxu0
  %v755 = vadd.f32 %v611, %v754
  %v756 = vpop.f32.mrf.mxu0
  %757 = vmatprep.mubr.f32.mxu0 0.0
  %758 = vmatmul.mubr.f32.gmra.mxu0 %v573
  %v759 = vpop.f32.mrf.mxu0
  %v760 = vadd.f32 %v616, %v759
  %v761 = vpop.f32.mrf.mxu0
  %762 = vmatprep.mubr.f32.mxu0 0.0
  %763 = vmatmul.mubr.f32.gmra.mxu0 %v574
  %v764 = vpop.f32.mrf.mxu0
  %v765 = vadd.f32 %v621, %v764
  %v766 = vpop.f32.mrf.mxu0
  %767 = vmatprep.mubr.f32.mxu0 0.0
  %768 = vmatmul.mubr.f32.gmra.mxu0 %v575
  %v769 = vpop.f32.mrf.mxu0
  %v770 = vadd.f32 %v626, %v769
  %v771 = vpop.f32.mrf.mxu0
  %772 = vmatprep.mubr.f32.mxu0 0.0
  %773 = vmatmul.mubr.f32.gmra.mxu0 %v576
  %v774 = vpop.f32.mrf.mxu0
  %v775 = vadd.f32 %v631, %v774
  %v776 = vpop.f32.mrf.mxu0
  %777 = vmatprep.mubr.f32.mxu0 0.0
  %778 = vmatmul.mubr.f32.gmra.mxu0 %v577
  %v779 = vpop.f32.mrf.mxu0
  %v780 = vadd.f32 %v636, %v779
  %v781 = vpop.f32.mrf.mxu0
  %782 = vmatprep.mubr.f32.mxu0 0.0
  %783 = vmatmul.mubr.f32.gmra.mxu0 %v578
  %v784 = vpop.f32.mrf.mxu0
  %v785 = vadd.f32 %v641, %v784
  %v786 = vpop.f32.mrf.mxu0
  %787 = vmatprep.mubr.f32.mxu0 0.0
  %788 = vmatmul.mubr.f32.gmra.mxu0 %v579
  %v789 = vpop.f32.mrf.mxu0
  %v790 = vadd.f32 %v646, %v789
  %v791 = vpop.f32.mrf.mxu0
  %792 = vmatprep.mubr.f32.mxu0 0.0
  %793 = vmatmul.mubr.f32.gmra.mxu0 %v580
  %v794 = vpop.f32.mrf.mxu0
  %v795 = vadd.f32 %v651, %v794
  %v796 = vpop.f32.mrf.mxu0
  %797 = vmatprep.mubr.f32.mxu0 0.0
  %798 = vmatmul.mubr.f32.gmra.mxu0 %v581
  %v799 = vpop.f32.mrf.mxu0
  %v800 = vadd.f32 %v656, %v799
  %v801 = vpop.f32.mrf.mxu0
  %802 = vmatprep.mubr.f32.mxu0 0.0
  %803 = vmatmul.mubr.f32.gmra.mxu0 %v582
  %v804 = vpop.f32.mrf.mxu0
  %v805 = vadd.f32 %v661, %v804
  %v806 = vpop.f32.mrf.mxu0
  %807 = vmatprep.mubr.f32.mxu0 0.0
  %808 = vmatmul.mubr.f32.gmra.mxu0 %v583
  %v809 = vpop.f32.mrf.mxu0
  %v810 = vadd.f32 %v666, %v809
  %v811 = vpop.f32.mrf.mxu0
  %812 = vmatprep.mubr.f32.mxu0 0.0
  %813 = vmatmul.mubr.f32.gmra.mxu0 %v584
  %v814 = vpop.f32.mrf.mxu0
  %v815 = vadd.f32 %v671, %v814
  %v816 = vpop.f32.mrf.mxu0
  %817 = vmatprep.mubr.f32.mxu0 0.0
  %818 = vmatmul.mubr.f32.gmra.mxu0 %v585
  %v819 = vpop.f32.mrf.mxu0
  %v820 = vadd.f32 %v676, %v819
  %v821 = vpop.f32.mrf.mxu0
  %822 = vmatprep.mubr.f32.mxu0 0.0
  %823 = vmatmul.mubr.f32.gmra.mxu0 %v586
  %v824 = vpop.f32.mrf.mxu0
  %v825 = vadd.f32 %v681, %v824
  %v826 = vpop.f32.mrf.mxu0
  %827 = vdwg.mxu0
  %v828 = vmax.f32 %v750, 0.0
  %v829 = vmax.f32 %v755, 0.0
  %v830 = vmax.f32 %v760, 0.0
  %v831 = vmax.f32 %v765, 0.0
  %v832 = vmax.f32 %v770, 0.0
  %v833 = vmax.f32 %v775, 0.0
  %v834 = vmax.f32 %v780, 0.0
  %v835 = vmax.f32 %v785, 0.0
  %v836 = vmax.f32 %v790, 0.0
  %v837 = vmax.f32 %v795, 0.0
  %v838 = vmax.f32 %v800, 0.0
  %v839 = vmax.f32 %v805, 0.0
  %v840 = vmax.f32 %v810, 0.0
  %v841 = vmax.f32 %v815, 0.0
  %v842 = vmax.f32 %v820, 0.0
  %v843 = vmax.f32 %v825, 0.0
  %v844 = vld [vmem:[%s5] sm:$0x3]
  %v845 = vld [vmem:[%s6] sm:$0x3]
  %847 = vset.pattern.permute.xlu0 0
  %848 = vperm.xlu0 %847, %v845
  %v849 = vpop.permute.xlu0 %848
  %851 = vmatprep.subr.mxu0 0.0
  %852 = vmatpush1.msra.mxu0 %v843
  %853 = vmatprep.subr.mxu0 0.0
  %854 = vmatpush1.msra.mxu0 %v842
  %855 = vmatprep.subr.mxu0 0.0
  %856 = vmatpush1.msra.mxu0 %v841
  %857 = vmatprep.subr.mxu0 0.0
  %858 = vmatpush1.msra.mxu0 %v840
  %859 = vmatprep.subr.mxu0 0.0
  %860 = vmatpush1.msra.mxu0 %v839
  %861 = vmatprep.subr.mxu0 0.0
  %862 = vmatpush1.msra.mxu0 %v838
  %863 = vmatprep.subr.mxu0 0.0
  %864 = vmatpush1.msra.mxu0 %v837
  %865 = vmatprep.subr.mxu0 0.0
  %866 = vmatpush1.msra.mxu0 %v836
  %867 = vmatprep.subr.mxu0 0.0
  %868 = vmatpush1.msra.mxu0 %v835
  %869 = vmatprep.subr.mxu0 0.0
  %870 = vmatpush1.msra.mxu0 %v834
  %871 = vmatprep.subr.mxu0 0.0
  %872 = vmatpush1.msra.mxu0 %v833
  %873 = vmatprep.subr.mxu0 0.0
  %874 = vmatpush1.msra.mxu0 %v832
  %875 = vmatprep.subr.mxu0 0.0
  %876 = vmatpush1.msra.mxu0 %v831
  %877 = vmatprep.subr.mxu0 0.0
  %878 = vmatpush1.msra.mxu0 %v830
  %879 = vmatprep.subr.mxu0 0.0
  %880 = vmatpush1.msra.mxu0 %v829
  %881 = vmatprep.subr.mxu0 0.0
  %882 = vmatpush1.msra.mxu0 %v828
  %883 = vmatprep.subr.mxu0 0.0
  %884 = vmatpush2.msra.mxu0 0.0
  %885 = vmatprep.subr.mxu0 0.0
  %886 = vmatpush2.msra.mxu0 0.0
  %887 = vmatprep.subr.mxu0 0.0
  %888 = vmatpush2.msra.mxu0 0.0
  %889 = vmatprep.subr.mxu0 0.0
  %890 = vmatpush2.msra.mxu0 0.0
  %891 = vmatprep.subr.mxu0 0.0
  %892 = vmatpush2.msra.mxu0 0.0
  %893 = vmatprep.subr.mxu0 0.0
  %894 = vmatpush2.msra.mxu0 0.0
  %895 = vmatprep.subr.mxu0 0.0
  %896 = vmatpush2.msra.mxu0 0.0
  %897 = vmatprep.subr.mxu0 0.0
  %898 = vmatpush2.msra.mxu0 0.0
  %899 = vmatprep.subr.mxu0 0.0
  %900 = vmatpush2.msra.mxu0 0.0
  %901 = vmatprep.subr.mxu0 0.0
  %902 = vmatpush2.msra.mxu0 0.0
  %903 = vmatprep.subr.mxu0 0.0
  %904 = vmatpush2.msra.mxu0 0.0
  %905 = vmatprep.subr.mxu0 0.0
  %906 = vmatpush2.msra.mxu0 0.0
  %907 = vmatprep.subr.mxu0 0.0
  %908 = vmatpush2.msra.mxu0 0.0
  %909 = vmatprep.subr.mxu0 0.0
  %910 = vmatpush2.msra.mxu0 0.0
  %911 = vmatprep.subr.mxu0 0.0
  %912 = vmatpush2.msra.mxu0 0.0
  %913 = vmatprep.subr.mxu0 0.0
  %914 = vmatpush2.msra.mxu0 0.0
  %915 = vmatprep.mubr.f32.mxu0 0.0
  %916 = vmatmul.mubr.f32.gmra.mxu0 %v844
  %v917 = vpop.f32.mrf.mxu0
  %v918 = vadd.f32 %v849, %v917
  %v919 = vpop.f32.mrf.mxu0
  %920 = vdwg.mxu0
  %921 = vst [vmem:[%s7] sm:$0x3] %v918
  // Predicated region
  $region30: #{dnn_forward.1} parent=0 // pred_check
    _
  $region31: #{dnn_forward.1} parent=0 // pred_check_branch
    %923 = sbr.rel (0) target = $region33
  $region32: #{dnn_forward.1} parent=0 // pred_region
    _
  $region33: #{dnn_forward.1} parent=0 // pred_fallthru
    _
  // Predicated region
  $region34: #{dnn_forward.1} parent=0 // pred_check
    _
  $region35: #{dnn_forward.1} parent=0 // pred_check_branch
    %925 = sbr.rel (0) target = $region37
  $region36: #{dnn_forward.1} parent=0 // pred_region
    _
  $region37: #{dnn_forward.1} parent=0 // pred_fallthru
    _

</llo_original>
